<compile_context>
chip_gen: v5e
topology: v5e:2x2
jax: 0.10.0
libtpu: 0.0.40
codegen_flags: <defaults>
</compile_context>

<pallas_src>
import jax
import jax.numpy as jnp
from jax.experimental import pallas as pl
from jax.experimental.pallas import tpu as pltpu


def autorec_kernel(h_ref, x_ref, o_ref):
    # h_ref: (F, 1) f32 VMEM, resident parameter (same block every grid step)
    # x_ref: (F, TB) VMEM tile, native input dtype, batch on the lane axis
    # o_ref: (1, TB) f32 VMEM tile, lane-dense output
    x = x_ref[...].astype(jnp.float32)                 # one full-tile cast (VPU)
    w = h_ref[...]                                     # (F, 1), lane-broadcast
    # VPU elementwise multiply + 5->1 sublane reduction on the XLU.
    o_ref[...] = jnp.sum(x * w, axis=0, keepdims=True)


def _choose_lane_tile(B, tb_max):
    """Lane tile: multiple of 128, multi-MiB when possible, >=2 tiles for 2 TCs."""
    tb_cover = pl.cdiv(B, 128) * 128          # smallest lane-aligned cover of B
    if tb_cover <= 2 * tb_max:
        # Batch fits in <= 2 max-size tiles: split it (roughly) in half so the
        # parallel axis can shard across the two v7x TensorCores.
        tb = max(128, pl.cdiv(pl.cdiv(B, 2), 128) * 128)
        tb = min(tb, tb_cover)
    else:
        tb = tb_max
    return tb


def autorec_forward(hidden, data, tb_max=256 * 1024):
    """hidden: (F,) float32, data: (B, F) any float dtype -> (B,) float32."""
    B, F = data.shape

    tb = _choose_lane_tile(B, tb_max)
    num_tiles = pl.cdiv(B, tb)

    # Layout plumbing: feature-major (F, B) so batch rides the lane axis.
    # TODO(synk): if upstream can produce activations feature-major (F, B),
    # pass them in directly and drop this transpose (halves end-to-end HBM bytes).
    x_t = jnp.transpose(data)                         # (F, B), native dtype
    h = hidden.astype(jnp.float32).reshape(F, 1)      # (F, 1) parameter column

    out2d = pl.pallas_call(
        autorec_kernel,
        out_shape=jax.ShapeDtypeStruct((1, B), jnp.float32),
        grid=(num_tiles,),
        in_specs=[
            # hidden: tiny (F, 1) block, constant index -> resident in VMEM
            pl.BlockSpec((F, 1), lambda i: (0, 0)),
            # data: (F, tb) lane-dense tiles over the batch axis (ragged last tile ok)
            pl.BlockSpec((F, tb), lambda i: (0, i)),
        ],
        out_specs=pl.BlockSpec((1, tb), lambda i: (0, i)),
        compiler_params=pltpu.CompilerParams(
            dimension_semantics=("parallel",),
            # Let XLA fuse the wrapper transpose(+cast) into the data operand.
            allow_input_fusion=[False, True],
        ),
        cost_estimate=pl.CostEstimate(
            flops=2 * B * F,
            transcendentals=0,
            bytes_accessed=B * F * data.dtype.itemsize + B * 4 + F * 4,
        ),
    )(h, x_t)

    return out2d.reshape(B)


if __name__ == "__main__":
    F = 5          # feature dim fixed by the module (nn.Parameter(torch.ones(5)))
    B = 8          # small batch

    # Deterministic parameter init exactly as in the module: torch.ones(5)
    hidden = jnp.ones((F,), dtype=jnp.float32)

    # Deterministic example input
    key = jax.random.PRNGKey(0)
    data = jax.random.normal(key, (B, F), dtype=jnp.float32)

    out = autorec_forward(hidden, data)
    out = jax.block_until_ready(out)

    # Correctness check against the pure-JAX reference of the PyTorch forward
    ref = jnp.sum(hidden * data, axis=1)
    assert out.shape == (B,)
    assert jnp.allclose(out, ref, atol=1e-5, rtol=1e-5)

    print("KERNEL_OK")
</pallas_src>

<mosaic_0001>
module attributes {stable_mosaic.version = 11 : i64} {
  func.func @autorec_kernel(%arg0: i32, %arg1: memref<5x1xf32, #tpu.memory_space<vmem>>, %arg2: memref<5x128xf32, #tpu.memory_space<vmem>>, %arg3: memref<1x128xf32, #tpu.memory_space<vmem>>) attributes {dimension_semantics = [#tpu.dimension_semantics<parallel>], iteration_bounds = array<i64: 1>, scalar_prefetch = 0 : i64, scratch_operands = 0 : i64, tpu.core_type = #tpu.core_type<tc>, window_params = [{pipeline_mode = #tpu.pipeline_mode<synchronous>, transform_indices = @transform_0, window_bounds = array<i64: 5, 1>}, {transform_indices = @transform_1, window_bounds = array<i64: 5, 128>}, {transform_indices = @transform_2, window_bounds = array<i64: 1, 128>}]} {
    %c0 = arith.constant 0 : index
    %c0_0 = arith.constant 0 : index
    %0 = vector.load %arg2[%c0, %c0_0] : memref<5x128xf32, #tpu.memory_space<vmem>>, vector<5x128xf32>
    %c0_1 = arith.constant 0 : index
    %c0_2 = arith.constant 0 : index
    %1 = vector.load %arg1[%c0_1, %c0_2] : memref<5x1xf32, #tpu.memory_space<vmem>>, vector<5x1xf32>
    %2 = vector.broadcast %1 : vector<5x1xf32> to vector<5x128xf32>
    %3 = arith.mulf %0, %2 : vector<5x128xf32>
    %cst = arith.constant dense<0.000000e+00> : vector<128xf32>
    %4 = vector.multi_reduction <add>, %3, %cst [0] : vector<5x128xf32> to vector<128xf32>
    %5 = vector.shape_cast %4 : vector<128xf32> to vector<1x128xf32>
    %c0_3 = arith.constant 0 : index
    %c0_4 = arith.constant 0 : index
    %6 = vector.load %arg3[%c0_3, %c0_4] : memref<1x128xf32, #tpu.memory_space<vmem>>, vector<1x128xf32>
    tpu.vector_store %arg3[%c0_3, %c0_4], %5 {strides = array<i32>} : memref<1x128xf32, #tpu.memory_space<vmem>>, vector<1x128xf32>,
    return
  }
  func.func @transform_0(%arg0: i32) -> (i32, i32) {
    %c0_i32 = arith.constant 0 : i32
    %c0_i32_0 = arith.constant 0 : i32
    %c0_i32_1 = arith.constant 0 : i32
    return %c0_i32, %c0_i32_0 : i32, i32
  }
  func.func @transform_1(%arg0: i32) -> (i32, i32) {
    %c0_i32 = arith.constant 0 : i32
    %c0_i32_0 = arith.constant 0 : i32
    return %c0_i32, %arg0 : i32, i32
  }
  func.func @transform_2(%arg0: i32) -> (i32, i32) {
    %c0_i32 = arith.constant 0 : i32
    %c0_i32_0 = arith.constant 0 : i32
    return %c0_i32, %arg0 : i32, i32
  }
}

</mosaic_0001>

<llo_original>
// kernel: tpu_custom_call.1
$region0: #{tpu_custom_call.1}
  #allocation0 [shape = 'u32[]', space=smem, size = 0x4, offset = 0x4, fixed_abs, tag = 'smem constant byte address 0x4 - core index']
  #allocation1 [shape = 'u32[72,128]{1,0:T(1,128)}', space=vmem, size = 0x9000, scoped, tag = 'internal scratch']
  %s0 = inlined_call_operand.vmem [shape: f32[5,1], index: 0, kind: input, shape index: {}]
  %s1 = inlined_call_operand.vmem [shape: f32[5,8], index: 1, kind: input, shape index: {}]
  %s2 = inlined_call_operand.hbm [shape: f32[1,8], index: 2, kind: output, shape index: {}]
  %s3 = sld [smem:[#allocation0]]
  $region18: #{tpu_custom_call.1} parent=0
    _
  %s5 = ssub.s32 1, %s3
  %s6 = scalar_select 0, %s5, %s3
  $region1: #{tpu_custom_call.1} parent=0
    #allocation2 [shape = 'u8[512]{0}', space=vmem, size = 0x400, scoped, tag = 'output window, operand 0, single buffered']
    #allocation3 [shape = 's32[1]{0}', space=sflag, size = 0x4, scoped, tag = 'scoped memory for tpu_custom_call.1']
    %7 = vsyncpa [#allocation3], 0
    // Predicated region
    $region2: #{tpu_custom_call.1} parent=1 // pred_check
      _
    $region3: #{tpu_custom_call.1} parent=1 // pred_check_branch
      %9 = sbr.rel (0) target = $region5
    $region4: #{tpu_custom_call.1} parent=1 // pred_region
      _
    $region5: #{tpu_custom_call.1} parent=1 // pred_fallthru
      _
    // Predicated region
    $region6: #{tpu_custom_call.1} parent=1 // pred_check
      _
    $region7: #{tpu_custom_call.1} parent=1 // pred_check_branch
      %11 = sbr.rel (0) target = $region9
    $region8: #{tpu_custom_call.1} parent=1 // pred_region
      _
    $region9: #{tpu_custom_call.1} parent=1 // pred_fallthru
      _
    %v12 = vld [vmem:[%s1] sm:$0x1f]
    %v13 = vld [vmem:[%s0] sm:$0x1f]
    %15 = vset.pattern.permute.xlu0 0
    %16 = vperm.xlu0 %15, %v13
    %v17 = vpop.permute.xlu0 %16
    %v19 = vmul.f32 %v12, %v17
    %vm20 = vcmask 1044480
    %v21 = vsel %vm20, %v19, 0.0
    %v22 = vrot.slane %v21, 4
    %v23 = vadd.f32 %v21, %v22
    %v24 = vrot.slane %v23, 2
    %v25 = vadd.f32 %v23, %v24
    %v26 = vrot.slane %v25, 1
    %v27 = vadd.f32 %v25, %v26
    %28 = vst [vmem:[#allocation2] sm:$0x1] %v27
    // Predicated region
    $region10: #{tpu_custom_call.1} parent=1 // pred_check
      _
    $region11: #{tpu_custom_call.1} parent=1 // pred_check_branch
      %30 = sbr.rel (0) target = $region13
    $region12: #{tpu_custom_call.1} parent=1 // pred_region
      %32 = vsyncadd [#allocation3], 0
      %s34 = sshll.u32 [#allocation2], 4
      %s35 = int_to_ptr.vmem [resolvable:$true] %s34
      %s36 = sshll.u32 %s2, 4
      %s37 = int_to_ptr.hbm [resolvable:$true] %s36
      %39 = dma.vmem_to_hbm [thread:$0]  %s35, 16, %s37, [#allocation3]
    $region13: #{tpu_custom_call.1} parent=1 // pred_fallthru
      _
    // Predicated region
    $region14: #{tpu_custom_call.1} parent=1 // pred_check
      _
    $region15: #{tpu_custom_call.1} parent=1 // pred_check_branch
      %41 = sbr.rel (0) target = $region17
    $region16: #{tpu_custom_call.1} parent=1 // pred_region
      %43 = dma.done [#allocation3], 16
    $region17: #{tpu_custom_call.1} parent=1 // pred_fallthru
      _
    %44 = vsyncpa [#allocation3], 1

</llo_original>
